<compile_context>
chip_gen: v7x
topology: tpu7x:2x2x1
jax: 0.10.0
libtpu: 0.0.40
codegen_flags: <defaults>
</compile_context>

<pallas_src>
import functools

import jax
import jax.numpy as jnp
from jax import lax
from jax.experimental import pallas as pl
from jax.experimental.pallas import tpu as pltpu


def _double_conv_kernel(x_ref, w1_ref, b1_ref, w2_ref, b2_ref, o_ref,
                        slab1_ref, slab2_ref, *, H, W):
    # x_ref:     (1, C_in, H*W)    one batch element, NCHW-flattened
    # w1_ref:    (C_mid, 9*C_in)   im2col weights, column order (dy, dx, c_in)
    # b1_ref:    (C_mid, 1)
    # w2_ref:    (C_out, 9*C_mid)
    # b2_ref:    (C_out, 1)
    # o_ref:     (1, C_out, H*W)
    # slab1_ref: (9*C_in, H*W)     VMEM scratch, im2col slab for conv1 (compute dtype)
    # slab2_ref: (9*C_mid, H*W)    VMEM scratch, im2col slab for conv2 (compute dtype)
    HW = H * W

    # Per-lane spatial indices (p = y*W + x) used to zero out-of-image taps.
    p = lax.broadcasted_iota(jnp.int32, (1, HW), 1)
    if (W & (W - 1)) == 0:          # W is a power of two -> cheap bitwise mod
        col = jnp.bitwise_and(p, W - 1)
    else:
        col = p % W
    row_ok = {0: p >= W, 1: None, 2: p < (H - 1) * W}      # y+dy-1 in range
    col_ok = {0: col >= 1, 1: None, 2: col <= W - 2}        # x+dx-1 in range

    def im2col(a, slab_ref):
        """a: (C, H*W) f32 activation -> write 9 shifted taps into slab_ref (9C, H*W)."""
        C = a.shape[0]
        for dy in range(3):
            for dx in range(3):
                s = (dy - 1) * W + (dx - 1)                  # flattened source offset
                # rolled[p] = a[p + s]  (lane rotation on the XLU)
                t = a if s == 0 else pltpu.roll(a, shift=(-s) % HW, axis=1)
                mask = row_ok[dy]
                if col_ok[dx] is not None:
                    mask = col_ok[dx] if mask is None else jnp.logical_and(mask, col_ok[dx])
                if mask is not None:
                    t = jnp.where(mask, t, 0.0)              # zero padding taps
                tap = dy * 3 + dx
                slab_ref[tap * C:(tap + 1) * C, :] = t.astype(slab_ref.dtype)

    # ---- conv1: single MXU matmul (C_mid, 9*C_in) @ (9*C_in, H*W) ----
    x = x_ref[0].astype(jnp.float32)                         # (C_in, H*W)
    im2col(x, slab1_ref)
    h = jnp.dot(w1_ref[...], slab1_ref[...],
                preferred_element_type=jnp.float32)           # (C_mid, H*W) f32
    h = jnp.maximum(h + b1_ref[...], 0.0)                     # bias + ReLU (f32 epilogue)

    # ---- conv2: single MXU matmul (C_out, 9*C_mid) @ (9*C_mid, H*W) ----
    im2col(h, slab2_ref)
    y = jnp.dot(w2_ref[...], slab2_ref[...],
                preferred_element_type=jnp.float32)           # (C_out, H*W) f32
    y = jnp.maximum(y + b2_ref[...], 0.0)
    o_ref[0] = y.astype(o_ref.dtype)                          # lane-dense store (H*W lanes)


def double_conv(x_nchw, w1, b1, w2, b2, *, compute_dtype=jnp.bfloat16):
    """x_nchw: (N, C_in, H, W); w1: (C_mid, C_in, 3, 3); b1: (C_mid,);
       w2: (C_out, C_mid, 3, 3); b2: (C_out,). Returns (N, C_out, H, W)."""
    N, C_in, H, W = x_nchw.shape
    C_mid = w1.shape[0]
    C_out = w2.shape[0]
    HW = H * W

    # Free reshapes only -- no transpose, no spatial pad, no extra HBM pass.
    x = x_nchw.reshape(N, C_in, HW)

    # im2col weight matrices; column order (dy, dx, c_in) matches the slab rows.
    w1m = jnp.transpose(w1, (0, 2, 3, 1)).reshape(C_mid, 9 * C_in).astype(compute_dtype)
    w2m = jnp.transpose(w2, (0, 2, 3, 1)).reshape(C_out, 9 * C_mid).astype(compute_dtype)
    b1c = b1.reshape(C_mid, 1).astype(jnp.float32)
    b2c = b2.reshape(C_out, 1).astype(jnp.float32)

    kernel = functools.partial(_double_conv_kernel, H=H, W=W)

    out = pl.pallas_call(
        kernel,
        out_shape=jax.ShapeDtypeStruct((N, C_out, HW), x_nchw.dtype),
        grid_spec=pltpu.PrefetchScalarGridSpec(
            num_scalar_prefetch=0,
            grid=(N,),
            in_specs=[
                pl.BlockSpec((1, C_in, HW), lambda n: (n, 0, 0)),
                pl.BlockSpec((C_mid, 9 * C_in), lambda n: (0, 0)),
                pl.BlockSpec((C_mid, 1), lambda n: (0, 0)),
                pl.BlockSpec((C_out, 9 * C_mid), lambda n: (0, 0)),
                pl.BlockSpec((C_out, 1), lambda n: (0, 0)),
            ],
            out_specs=pl.BlockSpec((1, C_out, HW), lambda n: (n, 0, 0)),
            scratch_shapes=[
                pltpu.VMEM((9 * C_in, HW), compute_dtype),   # conv1 im2col slab
                pltpu.VMEM((9 * C_mid, HW), compute_dtype),  # conv2 im2col slab
            ],
        ),
        compiler_params=pltpu.CompilerParams(
            dimension_semantics=("parallel",)),
    )(x, w1m, b1c, w2m, b2c)

    return out.reshape(N, C_out, H, W)


def _reference_double_conv(x, w1, b1, w2, b2):
    dn = ("NCHW", "OIHW", "NCHW")
    h = lax.conv_general_dilated(x, w1, (1, 1), ((1, 1), (1, 1)),
                                 dimension_numbers=dn)
    h = jnp.maximum(h + b1[None, :, None, None], 0.0)
    y = lax.conv_general_dilated(h, w2, (1, 1), ((1, 1), (1, 1)),
                                 dimension_numbers=dn)
    return jnp.maximum(y + b2[None, :, None, None], 0.0)


if __name__ == "__main__":
    N, C_in, C_out, H, W = 2, 4, 8, 16, 16

    key = jax.random.PRNGKey(0)
    kx, kw1, kb1, kw2, kb2 = jax.random.split(key, 5)

    x = jax.random.normal(kx, (N, C_in, H, W), jnp.float32)

    # PyTorch-style uniform(-1/sqrt(fan_in), 1/sqrt(fan_in)) init.
    fan1 = C_in * 3 * 3
    fan2 = C_out * 3 * 3
    w1 = jax.random.uniform(kw1, (C_out, C_in, 3, 3), jnp.float32,
                            -1.0 / fan1 ** 0.5, 1.0 / fan1 ** 0.5)
    b1 = jax.random.uniform(kb1, (C_out,), jnp.float32,
                            -1.0 / fan1 ** 0.5, 1.0 / fan1 ** 0.5)
    w2 = jax.random.uniform(kw2, (C_out, C_out, 3, 3), jnp.float32,
                            -1.0 / fan2 ** 0.5, 1.0 / fan2 ** 0.5)
    b2 = jax.random.uniform(kb2, (C_out,), jnp.float32,
                            -1.0 / fan2 ** 0.5, 1.0 / fan2 ** 0.5)

    y_ref = _reference_double_conv(x, w1, b1, w2, b2)

    # Exact-precision path (f32 MXU operands): tight correctness check.
    y_f32 = jax.block_until_ready(
        double_conv(x, w1, b1, w2, b2, compute_dtype=jnp.float32))
    assert y_f32.shape == (N, C_out, H, W), y_f32.shape
    assert jnp.allclose(y_f32, y_ref, rtol=1e-4, atol=1e-4), \
        float(jnp.max(jnp.abs(y_f32 - y_ref)))

    # Default fast path (bf16 MXU operands, f32 accumulation): loose check.
    y_bf16 = jax.block_until_ready(double_conv(x, w1, b1, w2, b2))
    assert y_bf16.shape == (N, C_out, H, W), y_bf16.shape
    assert jnp.allclose(y_bf16, y_ref, rtol=3e-2, atol=3e-2), \
        float(jnp.max(jnp.abs(y_bf16 - y_ref)))

    print("KERNEL_OK")
</pallas_src>

<mosaic_0001>
module attributes {stable_mosaic.version = 11 : i64} {
  func.func @_double_conv_kernel(%arg0: i32, %arg1: memref<1x4x256xf32, #tpu.memory_space<vmem>>, %arg2: memref<8x36xf32, #tpu.memory_space<vmem>>, %arg3: memref<8x1xf32, #tpu.memory_space<vmem>>, %arg4: memref<8x72xf32, #tpu.memory_space<vmem>>, %arg5: memref<8x1xf32, #tpu.memory_space<vmem>>, %arg6: memref<1x8x256xf32, #tpu.memory_space<vmem>>, %arg7: memref<36x256xf32, #tpu.memory_space<vmem>>, %arg8: memref<72x256xf32, #tpu.memory_space<vmem>>) attributes {dimension_semantics = [#tpu.dimension_semantics<parallel>], iteration_bounds = array<i64: 2>, scalar_prefetch = 0 : i64, scratch_operands = 2 : i64, tpu.core_type = #tpu.core_type<tc>, window_params = [{transform_indices = @transform_0, window_bounds = array<i64: 1, 4, 256>}, {pipeline_mode = #tpu.pipeline_mode<synchronous>, transform_indices = @transform_1, window_bounds = array<i64: 8, 36>}, {pipeline_mode = #tpu.pipeline_mode<synchronous>, transform_indices = @transform_2, window_bounds = array<i64: 8, 1>}, {pipeline_mode = #tpu.pipeline_mode<synchronous>, transform_indices = @transform_3, window_bounds = array<i64: 8, 72>}, {pipeline_mode = #tpu.pipeline_mode<synchronous>, transform_indices = @transform_4, window_bounds = array<i64: 8, 1>}, {transform_indices = @transform_5, window_bounds = array<i64: 1, 8, 256>}]} {
    %0 = tpu.iota {dimensions = array<i32: 1>} : vector<1x256xi32>
    %c15_i32 = arith.constant 15 : i32
    %1 = vector.broadcast %c15_i32 : i32 to vector<1x256xi32>
    %2 = arith.andi %0, %1 : vector<1x256xi32>
    %c16_i32 = arith.constant 16 : i32
    %3 = vector.broadcast %c16_i32 : i32 to vector<1x256xi32>
    %4 = arith.cmpi sge, %0, %3 : vector<1x256xi32>
    %c240_i32 = arith.constant 240 : i32
    %5 = vector.broadcast %c240_i32 : i32 to vector<1x256xi32>
    %6 = arith.cmpi slt, %0, %5 : vector<1x256xi32>
    %c1_i32 = arith.constant 1 : i32
    %7 = vector.broadcast %c1_i32 : i32 to vector<1x256xi32>
    %8 = arith.cmpi sge, %2, %7 : vector<1x256xi32>
    %c14_i32 = arith.constant 14 : i32
    %9 = vector.broadcast %c14_i32 : i32 to vector<1x256xi32>
    %10 = arith.cmpi sle, %2, %9 : vector<1x256xi32>
    %c0 = arith.constant 0 : index
    %c0_0 = arith.constant 0 : index
    %c0_1 = arith.constant 0 : index
    %11 = vector.load %arg1[%c0, %c0_0, %c0_1] : memref<1x4x256xf32, #tpu.memory_space<vmem>>, vector<1x4x256xf32>
    %12 = vector.shape_cast %11 : vector<1x4x256xf32> to vector<4x256xf32>
    %c17_i32 = arith.constant 17 : i32
    %13 = tpu.dynamic_rotate %12 by %c17_i32 dim 1 : vector<4x256xf32>, i32 -> vector<4x256xf32>
    %14 = arith.andi %4, %8 : vector<1x256xi1>
    %cst = arith.constant 0.000000e+00 : f32
    %15 = vector.shape_cast %14 : vector<1x256xi1> to vector<1x256xi1>
    %16 = vector.broadcast %15 : vector<1x256xi1> to vector<4x256xi1>
    %17 = vector.broadcast %cst : f32 to vector<4x256xf32>
    %18 = arith.select %16, %13, %17 : vector<4x256xi1>, vector<4x256xf32>
    %c0_2 = arith.constant 0 : index
    %c0_3 = arith.constant 0 : index
    %19 = vector.load %arg7[%c0_2, %c0_3] : memref<36x256xf32, #tpu.memory_space<vmem>>, vector<4x256xf32>
    tpu.vector_store %arg7[%c0_2, %c0_3], %18 {strides = array<i32>} : memref<36x256xf32, #tpu.memory_space<vmem>>, vector<4x256xf32>,
    %c16_i32_4 = arith.constant 16 : i32
    %20 = tpu.dynamic_rotate %12 by %c16_i32_4 dim 1 : vector<4x256xf32>, i32 -> vector<4x256xf32>
    %cst_5 = arith.constant 0.000000e+00 : f32
    %21 = vector.shape_cast %4 : vector<1x256xi1> to vector<1x256xi1>
    %22 = vector.broadcast %21 : vector<1x256xi1> to vector<4x256xi1>
    %23 = vector.broadcast %cst_5 : f32 to vector<4x256xf32>
    %24 = arith.select %22, %20, %23 : vector<4x256xi1>, vector<4x256xf32>
    %c4 = arith.constant 4 : index
    %c0_6 = arith.constant 0 : index
    %25 = vector.load %arg7[%c4, %c0_6] : memref<36x256xf32, #tpu.memory_space<vmem>>, vector<4x256xf32>
    tpu.vector_store %arg7[%c4, %c0_6], %24 {strides = array<i32>} : memref<36x256xf32, #tpu.memory_space<vmem>>, vector<4x256xf32>,
    %c15_i32_7 = arith.constant 15 : i32
    %26 = tpu.dynamic_rotate %12 by %c15_i32_7 dim 1 : vector<4x256xf32>, i32 -> vector<4x256xf32>
    %27 = arith.andi %4, %10 : vector<1x256xi1>
    %cst_8 = arith.constant 0.000000e+00 : f32
    %28 = vector.shape_cast %27 : vector<1x256xi1> to vector<1x256xi1>
    %29 = vector.broadcast %28 : vector<1x256xi1> to vector<4x256xi1>
    %30 = vector.broadcast %cst_8 : f32 to vector<4x256xf32>
    %31 = arith.select %29, %26, %30 : vector<4x256xi1>, vector<4x256xf32>
    %c8 = arith.constant 8 : index
    %c0_9 = arith.constant 0 : index
    %32 = vector.load %arg7[%c8, %c0_9] : memref<36x256xf32, #tpu.memory_space<vmem>>, vector<4x256xf32>
    tpu.vector_store %arg7[%c8, %c0_9], %31 {strides = array<i32>} : memref<36x256xf32, #tpu.memory_space<vmem>>, vector<4x256xf32>,
    %c1_i32_10 = arith.constant 1 : i32
    %33 = tpu.dynamic_rotate %12 by %c1_i32_10 dim 1 : vector<4x256xf32>, i32 -> vector<4x256xf32>
    %cst_11 = arith.constant 0.000000e+00 : f32
    %34 = vector.shape_cast %8 : vector<1x256xi1> to vector<1x256xi1>
    %35 = vector.broadcast %34 : vector<1x256xi1> to vector<4x256xi1>
    %36 = vector.broadcast %cst_11 : f32 to vector<4x256xf32>
    %37 = arith.select %35, %33, %36 : vector<4x256xi1>, vector<4x256xf32>
    %c12 = arith.constant 12 : index
    %c0_12 = arith.constant 0 : index
    %38 = vector.load %arg7[%c12, %c0_12] : memref<36x256xf32, #tpu.memory_space<vmem>>, vector<4x256xf32>
    tpu.vector_store %arg7[%c12, %c0_12], %37 {strides = array<i32>} : memref<36x256xf32, #tpu.memory_space<vmem>>, vector<4x256xf32>,
    %c16 = arith.constant 16 : index
    %c0_13 = arith.constant 0 : index
    %39 = vector.load %arg7[%c16, %c0_13] : memref<36x256xf32, #tpu.memory_space<vmem>>, vector<4x256xf32>
    tpu.vector_store %arg7[%c16, %c0_13], %12 {strides = array<i32>} : memref<36x256xf32, #tpu.memory_space<vmem>>, vector<4x256xf32>,
    %c255_i32 = arith.constant 255 : i32
    %40 = tpu.dynamic_rotate %12 by %c255_i32 dim 1 : vector<4x256xf32>, i32 -> vector<4x256xf32>
    %cst_14 = arith.constant 0.000000e+00 : f32
    %41 = vector.shape_cast %10 : vector<1x256xi1> to vector<1x256xi1>
    %42 = vector.broadcast %41 : vector<1x256xi1> to vector<4x256xi1>
    %43 = vector.broadcast %cst_14 : f32 to vector<4x256xf32>
    %44 = arith.select %42, %40, %43 : vector<4x256xi1>, vector<4x256xf32>
    %c20 = arith.constant 20 : index
    %c0_15 = arith.constant 0 : index
    %45 = vector.load %arg7[%c20, %c0_15] : memref<36x256xf32, #tpu.memory_space<vmem>>, vector<4x256xf32>
    tpu.vector_store %arg7[%c20, %c0_15], %44 {strides = array<i32>} : memref<36x256xf32, #tpu.memory_space<vmem>>, vector<4x256xf32>,
    %c241_i32 = arith.constant 241 : i32
    %46 = tpu.dynamic_rotate %12 by %c241_i32 dim 1 : vector<4x256xf32>, i32 -> vector<4x256xf32>
    %47 = arith.andi %6, %8 : vector<1x256xi1>
    %cst_16 = arith.constant 0.000000e+00 : f32
    %48 = vector.shape_cast %47 : vector<1x256xi1> to vector<1x256xi1>
    %49 = vector.broadcast %48 : vector<1x256xi1> to vector<4x256xi1>
    %50 = vector.broadcast %cst_16 : f32 to vector<4x256xf32>
    %51 = arith.select %49, %46, %50 : vector<4x256xi1>, vector<4x256xf32>
    %c24 = arith.constant 24 : index
    %c0_17 = arith.constant 0 : index
    %52 = vector.load %arg7[%c24, %c0_17] : memref<36x256xf32, #tpu.memory_space<vmem>>, vector<4x256xf32>
    tpu.vector_store %arg7[%c24, %c0_17], %51 {strides = array<i32>} : memref<36x256xf32, #tpu.memory_space<vmem>>, vector<4x256xf32>,
    %c240_i32_18 = arith.constant 240 : i32
    %53 = tpu.dynamic_rotate %12 by %c240_i32_18 dim 1 : vector<4x256xf32>, i32 -> vector<4x256xf32>
    %cst_19 = arith.constant 0.000000e+00 : f32
    %54 = vector.shape_cast %6 : vector<1x256xi1> to vector<1x256xi1>
    %55 = vector.broadcast %54 : vector<1x256xi1> to vector<4x256xi1>
    %56 = vector.broadcast %cst_19 : f32 to vector<4x256xf32>
    %57 = arith.select %55, %53, %56 : vector<4x256xi1>, vector<4x256xf32>
    %c28 = arith.constant 28 : index
    %c0_20 = arith.constant 0 : index
    %58 = vector.load %arg7[%c28, %c0_20] : memref<36x256xf32, #tpu.memory_space<vmem>>, vector<4x256xf32>
    tpu.vector_store %arg7[%c28, %c0_20], %57 {strides = array<i32>} : memref<36x256xf32, #tpu.memory_space<vmem>>, vector<4x256xf32>,
    %c239_i32 = arith.constant 239 : i32
    %59 = tpu.dynamic_rotate %12 by %c239_i32 dim 1 : vector<4x256xf32>, i32 -> vector<4x256xf32>
    %60 = arith.andi %6, %10 : vector<1x256xi1>
    %cst_21 = arith.constant 0.000000e+00 : f32
    %61 = vector.shape_cast %60 : vector<1x256xi1> to vector<1x256xi1>
    %62 = vector.broadcast %61 : vector<1x256xi1> to vector<4x256xi1>
    %63 = vector.broadcast %cst_21 : f32 to vector<4x256xf32>
    %64 = arith.select %62, %59, %63 : vector<4x256xi1>, vector<4x256xf32>
    %c32 = arith.constant 32 : index
    %c0_22 = arith.constant 0 : index
    %65 = vector.load %arg7[%c32, %c0_22] : memref<36x256xf32, #tpu.memory_space<vmem>>, vector<4x256xf32>
    tpu.vector_store %arg7[%c32, %c0_22], %64 {strides = array<i32>} : memref<36x256xf32, #tpu.memory_space<vmem>>, vector<4x256xf32>,
    %c0_23 = arith.constant 0 : index
    %c0_24 = arith.constant 0 : index
    %66 = vector.load %arg2[%c0_23, %c0_24] : memref<8x36xf32, #tpu.memory_space<vmem>>, vector<8x36xf32>
    %c0_25 = arith.constant 0 : index
    %c0_26 = arith.constant 0 : index
    %67 = vector.load %arg7[%c0_25, %c0_26] : memref<36x256xf32, #tpu.memory_space<vmem>>, vector<36x256xf32>
    %cst_27 = arith.constant dense<0.000000e+00> : vector<8x256xf32>
    %68 = tpu.matmul %66, %67, %cst_27 {dimension_numbers = #tpu.dot_dimension_numbers<[1], [0], [0], [1], [0, 0, 1, 1], [], []>} : vector<8x36xf32>, vector<36x256xf32>, vector<8x256xf32> -> vector<8x256xf32>
    %c0_28 = arith.constant 0 : index
    %c0_29 = arith.constant 0 : index
    %69 = vector.load %arg3[%c0_28, %c0_29] : memref<8x1xf32, #tpu.memory_space<vmem>>, vector<8x1xf32>
    %70 = vector.broadcast %69 : vector<8x1xf32> to vector<8x256xf32>
    %71 = arith.addf %68, %70 : vector<8x256xf32>
    %cst_30 = arith.constant 0.000000e+00 : f32
    %72 = vector.broadcast %cst_30 : f32 to vector<8x256xf32>
    %73 = arith.maximumf %71, %72 : vector<8x256xf32>
    %c17_i32_31 = arith.constant 17 : i32
    %74 = tpu.dynamic_rotate %73 by %c17_i32_31 dim 1 : vector<8x256xf32>, i32 -> vector<8x256xf32>
    %75 = arith.andi %4, %8 : vector<1x256xi1>
    %cst_32 = arith.constant 0.000000e+00 : f32
    %76 = vector.shape_cast %75 : vector<1x256xi1> to vector<1x256xi1>
    %77 = vector.broadcast %76 : vector<1x256xi1> to vector<8x256xi1>
    %78 = vector.broadcast %cst_32 : f32 to vector<8x256xf32>
    %79 = arith.select %77, %74, %78 : vector<8x256xi1>, vector<8x256xf32>
    %c0_33 = arith.constant 0 : index
    %c0_34 = arith.constant 0 : index
    %80 = vector.load %arg8[%c0_33, %c0_34] : memref<72x256xf32, #tpu.memory_space<vmem>>, vector<8x256xf32>
    tpu.vector_store %arg8[%c0_33, %c0_34], %79 {strides = array<i32>} : memref<72x256xf32, #tpu.memory_space<vmem>>, vector<8x256xf32>,
    %c16_i32_35 = arith.constant 16 : i32
    %81 = tpu.dynamic_rotate %73 by %c16_i32_35 dim 1 : vector<8x256xf32>, i32 -> vector<8x256xf32>
    %cst_36 = arith.constant 0.000000e+00 : f32
    %82 = vector.shape_cast %4 : vector<1x256xi1> to vector<1x256xi1>
    %83 = vector.broadcast %82 : vector<1x256xi1> to vector<8x256xi1>
    %84 = vector.broadcast %cst_36 : f32 to vector<8x256xf32>
    %85 = arith.select %83, %81, %84 : vector<8x256xi1>, vector<8x256xf32>
    %c8_37 = arith.constant 8 : index
    %c0_38 = arith.constant 0 : index
    %86 = vector.load %arg8[%c8_37, %c0_38] : memref<72x256xf32, #tpu.memory_space<vmem>>, vector<8x256xf32>
    tpu.vector_store %arg8[%c8_37, %c0_38], %85 {strides = array<i32>} : memref<72x256xf32, #tpu.memory_space<vmem>>, vector<8x256xf32>,
    %c15_i32_39 = arith.constant 15 : i32
    %87 = tpu.dynamic_rotate %73 by %c15_i32_39 dim 1 : vector<8x256xf32>, i32 -> vector<8x256xf32>
    %88 = arith.andi %4, %10 : vector<1x256xi1>
    %cst_40 = arith.constant 0.000000e+00 : f32
    %89 = vector.shape_cast %88 : vector<1x256xi1> to vector<1x256xi1>
    %90 = vector.broadcast %89 : vector<1x256xi1> to vector<8x256xi1>
    %91 = vector.broadcast %cst_40 : f32 to vector<8x256xf32>
    %92 = arith.select %90, %87, %91 : vector<8x256xi1>, vector<8x256xf32>
    %c16_41 = arith.constant 16 : index
    %c0_42 = arith.constant 0 : index
    %93 = vector.load %arg8[%c16_41, %c0_42] : memref<72x256xf32, #tpu.memory_space<vmem>>, vector<8x256xf32>
    tpu.vector_store %arg8[%c16_41, %c0_42], %92 {strides = array<i32>} : memref<72x256xf32, #tpu.memory_space<vmem>>, vector<8x256xf32>,
    %c1_i32_43 = arith.constant 1 : i32
    %94 = tpu.dynamic_rotate %73 by %c1_i32_43 dim 1 : vector<8x256xf32>, i32 -> vector<8x256xf32>
    %cst_44 = arith.constant 0.000000e+00 : f32
    %95 = vector.shape_cast %8 : vector<1x256xi1> to vector<1x256xi1>
    %96 = vector.broadcast %95 : vector<1x256xi1> to vector<8x256xi1>
    %97 = vector.broadcast %cst_44 : f32 to vector<8x256xf32>
    %98 = arith.select %96, %94, %97 : vector<8x256xi1>, vector<8x256xf32>
    %c24_45 = arith.constant 24 : index
    %c0_46 = arith.constant 0 : index
    %99 = vector.load %arg8[%c24_45, %c0_46] : memref<72x256xf32, #tpu.memory_space<vmem>>, vector<8x256xf32>
    tpu.vector_store %arg8[%c24_45, %c0_46], %98 {strides = array<i32>} : memref<72x256xf32, #tpu.memory_space<vmem>>, vector<8x256xf32>,
    %c32_47 = arith.constant 32 : index
    %c0_48 = arith.constant 0 : index
    %100 = vector.load %arg8[%c32_47, %c0_48] : memref<72x256xf32, #tpu.memory_space<vmem>>, vector<8x256xf32>
    tpu.vector_store %arg8[%c32_47, %c0_48], %73 {strides = array<i32>} : memref<72x256xf32, #tpu.memory_space<vmem>>, vector<8x256xf32>,
    %c255_i32_49 = arith.constant 255 : i32
    %101 = tpu.dynamic_rotate %73 by %c255_i32_49 dim 1 : vector<8x256xf32>, i32 -> vector<8x256xf32>
    %cst_50 = arith.constant 0.000000e+00 : f32
    %102 = vector.shape_cast %10 : vector<1x256xi1> to vector<1x256xi1>
    %103 = vector.broadcast %102 : vector<1x256xi1> to vector<8x256xi1>
    %104 = vector.broadcast %cst_50 : f32 to vector<8x256xf32>
    %105 = arith.select %103, %101, %104 : vector<8x256xi1>, vector<8x256xf32>
    %c40 = arith.constant 40 : index
    %c0_51 = arith.constant 0 : index
    %106 = vector.load %arg8[%c40, %c0_51] : memref<72x256xf32, #tpu.memory_space<vmem>>, vector<8x256xf32>
    tpu.vector_store %arg8[%c40, %c0_51], %105 {strides = array<i32>} : memref<72x256xf32, #tpu.memory_space<vmem>>, vector<8x256xf32>,
    %c241_i32_52 = arith.constant 241 : i32
    %107 = tpu.dynamic_rotate %73 by %c241_i32_52 dim 1 : vector<8x256xf32>, i32 -> vector<8x256xf32>
    %108 = arith.andi %6, %8 : vector<1x256xi1>
    %cst_53 = arith.constant 0.000000e+00 : f32
    %109 = vector.shape_cast %108 : vector<1x256xi1> to vector<1x256xi1>
    %110 = vector.broadcast %109 : vector<1x256xi1> to vector<8x256xi1>
    %111 = vector.broadcast %cst_53 : f32 to vector<8x256xf32>
    %112 = arith.select %110, %107, %111 : vector<8x256xi1>, vector<8x256xf32>
    %c48 = arith.constant 48 : index
    %c0_54 = arith.constant 0 : index
    %113 = vector.load %arg8[%c48, %c0_54] : memref<72x256xf32, #tpu.memory_space<vmem>>, vector<8x256xf32>
    tpu.vector_store %arg8[%c48, %c0_54], %112 {strides = array<i32>} : memref<72x256xf32, #tpu.memory_space<vmem>>, vector<8x256xf32>,
    %c240_i32_55 = arith.constant 240 : i32
    %114 = tpu.dynamic_rotate %73 by %c240_i32_55 dim 1 : vector<8x256xf32>, i32 -> vector<8x256xf32>
    %cst_56 = arith.constant 0.000000e+00 : f32
    %115 = vector.shape_cast %6 : vector<1x256xi1> to vector<1x256xi1>
    %116 = vector.broadcast %115 : vector<1x256xi1> to vector<8x256xi1>
    %117 = vector.broadcast %cst_56 : f32 to vector<8x256xf32>
    %118 = arith.select %116, %114, %117 : vector<8x256xi1>, vector<8x256xf32>
    %c56 = arith.constant 56 : index
    %c0_57 = arith.constant 0 : index
    %119 = vector.load %arg8[%c56, %c0_57] : memref<72x256xf32, #tpu.memory_space<vmem>>, vector<8x256xf32>
    tpu.vector_store %arg8[%c56, %c0_57], %118 {strides = array<i32>} : memref<72x256xf32, #tpu.memory_space<vmem>>, vector<8x256xf32>,
    %c239_i32_58 = arith.constant 239 : i32
    %120 = tpu.dynamic_rotate %73 by %c239_i32_58 dim 1 : vector<8x256xf32>, i32 -> vector<8x256xf32>
    %121 = arith.andi %6, %10 : vector<1x256xi1>
    %cst_59 = arith.constant 0.000000e+00 : f32
    %122 = vector.shape_cast %121 : vector<1x256xi1> to vector<1x256xi1>
    %123 = vector.broadcast %122 : vector<1x256xi1> to vector<8x256xi1>
    %124 = vector.broadcast %cst_59 : f32 to vector<8x256xf32>
    %125 = arith.select %123, %120, %124 : vector<8x256xi1>, vector<8x256xf32>
    %c64 = arith.constant 64 : index
    %c0_60 = arith.constant 0 : index
    %126 = vector.load %arg8[%c64, %c0_60] : memref<72x256xf32, #tpu.memory_space<vmem>>, vector<8x256xf32>
    tpu.vector_store %arg8[%c64, %c0_60], %125 {strides = array<i32>} : memref<72x256xf32, #tpu.memory_space<vmem>>, vector<8x256xf32>,
    %c0_61 = arith.constant 0 : index
    %c0_62 = arith.constant 0 : index
    %127 = vector.load %arg4[%c0_61, %c0_62] : memref<8x72xf32, #tpu.memory_space<vmem>>, vector<8x72xf32>
    %c0_63 = arith.constant 0 : index
    %c0_64 = arith.constant 0 : index
    %128 = vector.load %arg8[%c0_63, %c0_64] : memref<72x256xf32, #tpu.memory_space<vmem>>, vector<72x256xf32>
    %cst_65 = arith.constant dense<0.000000e+00> : vector<8x256xf32>
    %129 = tpu.matmul %127, %128, %cst_65 {dimension_numbers = #tpu.dot_dimension_numbers<[1], [0], [0], [1], [0, 0, 1, 1], [], []>} : vector<8x72xf32>, vector<72x256xf32>, vector<8x256xf32> -> vector<8x256xf32>
    %c0_66 = arith.constant 0 : index
    %c0_67 = arith.constant 0 : index
    %130 = vector.load %arg5[%c0_66, %c0_67] : memref<8x1xf32, #tpu.memory_space<vmem>>, vector<8x1xf32>
    %131 = vector.broadcast %130 : vector<8x1xf32> to vector<8x256xf32>
    %132 = arith.addf %129, %131 : vector<8x256xf32>
    %cst_68 = arith.constant 0.000000e+00 : f32
    %133 = vector.broadcast %cst_68 : f32 to vector<8x256xf32>
    %134 = arith.maximumf %132, %133 : vector<8x256xf32>
    %c0_69 = arith.constant 0 : index
    %c0_70 = arith.constant 0 : index
    %c0_71 = arith.constant 0 : index
    %135 = vector.load %arg6[%c0_69, %c0_70, %c0_71] : memref<1x8x256xf32, #tpu.memory_space<vmem>>, vector<1x8x256xf32>
    %136 = vector.shape_cast %135 : vector<1x8x256xf32> to vector<8x256xf32>
    %137 = vector.shape_cast %134 : vector<8x256xf32> to vector<1x8x256xf32>
    tpu.vector_store %arg6[%c0_69, %c0_70, %c0_71], %137 {strides = array<i32>} : memref<1x8x256xf32, #tpu.memory_space<vmem>>, vector<1x8x256xf32>,
    return
  }
  func.func @transform_0(%arg0: i32) -> (i32, i32, i32) {
    %c0_i32 = arith.constant 0 : i32
    %c0_i32_0 = arith.constant 0 : i32
    %c0_i32_1 = arith.constant 0 : i32
    return %arg0, %c0_i32, %c0_i32_0 : i32, i32, i32
  }
  func.func @transform_1(%arg0: i32) -> (i32, i32) {
    %c0_i32 = arith.constant 0 : i32
    %c0_i32_0 = arith.constant 0 : i32
    %c0_i32_1 = arith.constant 0 : i32
    return %c0_i32, %c0_i32_0 : i32, i32
  }
  func.func @transform_2(%arg0: i32) -> (i32, i32) {
    %c0_i32 = arith.constant 0 : i32
    %c0_i32_0 = arith.constant 0 : i32
    %c0_i32_1 = arith.constant 0 : i32
    return %c0_i32, %c0_i32_0 : i32, i32
  }
  func.func @transform_3(%arg0: i32) -> (i32, i32) {
    %c0_i32 = arith.constant 0 : i32
    %c0_i32_0 = arith.constant 0 : i32
    %c0_i32_1 = arith.constant 0 : i32
    return %c0_i32, %c0_i32_0 : i32, i32
  }
  func.func @transform_4(%arg0: i32) -> (i32, i32) {
    %c0_i32 = arith.constant 0 : i32
    %c0_i32_0 = arith.constant 0 : i32
    %c0_i32_1 = arith.constant 0 : i32
    return %c0_i32, %c0_i32_0 : i32, i32
  }
  func.func @transform_5(%arg0: i32) -> (i32, i32, i32) {
    %c0_i32 = arith.constant 0 : i32
    %c0_i32_0 = arith.constant 0 : i32
    %c0_i32_1 = arith.constant 0 : i32
    return %arg0, %c0_i32, %c0_i32_0 : i32, i32, i32
  }
}

</mosaic_0001>

<llo_original>
// kernel: tpu_custom_call.1
$region0: #{tpu_custom_call.1}
  #allocation0 [shape = 'u32[]', space=smem, size = 0x4, offset = 0x4, fixed_abs, tag = 'smem constant byte address 0x4 - core index']
  #allocation1 [shape = 'u32[144,128]{1,0:T(1,128)}', space=vmem, size = 0x12000, scoped, tag = 'internal scratch']
  #allocation2 [shape = 'f32[36,256]{1,0:T(8,128)}', space=vmem, size = 0xa000, scoped, tag = 'scratch operand']
  #allocation3 [shape = 'f32[72,256]{1,0:T(8,128)}', space=vmem, size = 0x12000, scoped, tag = 'scratch operand']
  %s0 = inlined_call_operand.vmem [shape: f32[2,4,256], index: 0, kind: input, shape index: {}]
  %s1 = inlined_call_operand.hbm [shape: f32[8,36], index: 1, kind: input, shape index: {}]
  %s2 = inlined_call_operand.vmem [shape: f32[8,1], index: 2, kind: input, shape index: {}]
  %s3 = inlined_call_operand.vmem [shape: f32[8,72], index: 3, kind: input, shape index: {}]
  %s4 = inlined_call_operand.vmem [shape: f32[8,1], index: 4, kind: input, shape index: {}]
  %s5 = inlined_call_operand.hbm [shape: f32[2,8,256], index: 5, kind: output, shape index: {}]
  %s6 = sld [smem:[#allocation0]]
  $region57: #{tpu_custom_call.1} parent=0
    _
  %s8 = ssub.s32 1, %s6
  %s9 = scalar_select 0, %s8, %s6
  $region1: #{tpu_custom_call.1} parent=0
    #allocation4 [shape = 'u8[4096]{0}', space=vmem, size = 0x1000, scoped, tag = 'input window, operand 1, single buffered']
    #allocation5 [shape = 's32[2]{0}', space=sflag, size = 0x8, scoped, tag = 'scoped memory for tpu_custom_call.1']
    #allocation6 [shape = 's32[2]{0}', space=sflag, size = 0x8, scoped, tag = 'scoped memory for tpu_custom_call.1']
    #allocation7 [shape = 'u8[16384]{0}', space=vmem, size = 0x4000, scoped, tag = 'output window, operand 0']
    %10 = vsyncpa [#allocation5], 0
    %11 = vsyncpa [#allocation6], 0
    %s12 = scalar_lea.sflag [#allocation6], 1
    %13 = vsyncpa %s12, 0
    loop: start=0, step=1, limit=4
    $region2: #{tpu_custom_call.1} parent=1 // loop_pre_header
      _
    $region3: #{tpu_custom_call.1} parent=1 // loop_header
      %s15 = sphi 0, %s19
      %p16 = scmp.ge.s32.totalorder %s15, 4
      %s25 = sphi 0, %s27
      %s28 = sphi 0, %s25
      %s29 = sphi 0, %s28
      %s45 = sphi 0, %s29
      %s49 = sphi 0, %s49
      %s51 = sphi 0, %s49
      %s52 = sphi 0, %s51
      %s66 = sphi 0, %s52
      %s70 = sphi 0, %s70
      %s72 = sphi 0, %s70
      %s73 = sphi 0, %s72
      %s87 = sphi 0, %s73
      %s91 = sphi 0, %s91
      %s93 = sphi 0, %s91
      %s94 = sphi 0, %s93
      %s108 = sphi 0, %s94
      %s112 = sphi 0, %s112
      %s114 = sphi 0, %s112
      %s115 = sphi 0, %s114
      %s129 = sphi 0, %s115
      %s135 = sphi 0, %s137
      %s138 = sphi 0, %s135
      %s139 = sphi 0, %s138
      %s155 = sphi 0, %s139
    $region4: #{tpu_custom_call.1} parent=1 // loop_header_branch
      %18 = sbr.rel (%p16) target = $region8
    $region5: #{tpu_custom_call.1} parent=1 // loop_body
      %s20 = ssub.s32 %s15, 1
      %s21 = ssub.s32 %s15, 2
      %s22 = sadd.s32 %s15, 1
      %s23 = ssub.s32 %s15, %s22
      %p24 = scmp.eq.s32.totalorder %s23, 0
      %s26 = sadd.s32 %s25, 1
      %s27 = scalar_select %p24, %s25, %s26
      %p30 = pneg %p24
      %p31 = scmp.eq.s32.totalorder %s15, 1
      %p32 = por %p30, %p31
      %p33 = scmp.ne.s32.totalorder %s25, %s28
      %p34 = scmp.eq.s32.totalorder %s15, 0
      %p35 = por %p33, %p34
      %p36 = scmp.ne.s32.totalorder %s25, %s28
      %p37 = scmp.eq.s32.totalorder %s20, 1
      %p38 = por %p36, %p37
      %p39 = scmp.ne.s32.totalorder %s28, %s29
      %p40 = scmp.eq.s32.totalorder %s20, 0
      %p41 = por %p39, %p40
      %p42 = scmp.ne.s32.totalorder %s28, %s29
      %p43 = scmp.eq.s32.totalorder %s21, 1
      %p44 = por %p42, %p43
      %p46 = scmp.ne.s32.totalorder %s29, %s45
      %p47 = scmp.eq.s32.totalorder %s21, 0
      %p48 = por %p46, %p47
      %s50 = sadd.s32 %s49, 1
      %p53 = scmp.eq.s32.totalorder %s15, 1
      %p54 = scmp.ne.s32.totalorder %s49, %s51
      %p55 = scmp.eq.s32.totalorder %s15, 0
      %p56 = por %p54, %p55
      %p57 = scmp.ne.s32.totalorder %s49, %s51
      %p58 = scmp.eq.s32.totalorder %s20, 1
      %p59 = por %p57, %p58
      %p60 = scmp.ne.s32.totalorder %s51, %s52
      %p61 = scmp.eq.s32.totalorder %s20, 0
      %p62 = por %p60, %p61
      %p63 = scmp.ne.s32.totalorder %s51, %s52
      %p64 = scmp.eq.s32.totalorder %s21, 1
      %p65 = por %p63, %p64
      %p67 = scmp.ne.s32.totalorder %s52, %s66
      %p68 = scmp.eq.s32.totalorder %s21, 0
      %p69 = por %p67, %p68
      %s71 = sadd.s32 %s70, 1
      %p74 = scmp.eq.s32.totalorder %s15, 1
      %p75 = scmp.ne.s32.totalorder %s70, %s72
      %p76 = scmp.eq.s32.totalorder %s15, 0
      %p77 = por %p75, %p76
      %p78 = scmp.ne.s32.totalorder %s70, %s72
      %p79 = scmp.eq.s32.totalorder %s20, 1
      %p80 = por %p78, %p79
      %p81 = scmp.ne.s32.totalorder %s72, %s73
      %p82 = scmp.eq.s32.totalorder %s20, 0
      %p83 = por %p81, %p82
      %p84 = scmp.ne.s32.totalorder %s72, %s73
      %p85 = scmp.eq.s32.totalorder %s21, 1
      %p86 = por %p84, %p85
      %p88 = scmp.ne.s32.totalorder %s73, %s87
      %p89 = scmp.eq.s32.totalorder %s21, 0
      %p90 = por %p88, %p89
      %s92 = sadd.s32 %s91, 1
      %p95 = scmp.eq.s32.totalorder %s15, 1
      %p96 = scmp.ne.s32.totalorder %s91, %s93
      %p97 = scmp.eq.s32.totalorder %s15, 0
      %p98 = por %p96, %p97
      %p99 = scmp.ne.s32.totalorder %s91, %s93
      %p100 = scmp.eq.s32.totalorder %s20, 1
      %p101 = por %p99, %p100
      %p102 = scmp.ne.s32.totalorder %s93, %s94
      %p103 = scmp.eq.s32.totalorder %s20, 0
      %p104 = por %p102, %p103
      %p105 = scmp.ne.s32.totalorder %s93, %s94
      %p106 = scmp.eq.s32.totalorder %s21, 1
      %p107 = por %p105, %p106
      %p109 = scmp.ne.s32.totalorder %s94, %s108
      %p110 = scmp.eq.s32.totalorder %s21, 0
      %p111 = por %p109, %p110
      %s113 = sadd.s32 %s112, 1
      %p116 = scmp.eq.s32.totalorder %s15, 1
      %p117 = scmp.ne.s32.totalorder %s112, %s114
      %p118 = scmp.eq.s32.totalorder %s15, 0
      %p119 = por %p117, %p118
      %p120 = scmp.ne.s32.totalorder %s112, %s114
      %p121 = scmp.eq.s32.totalorder %s20, 1
      %p122 = por %p120, %p121
      %p123 = scmp.ne.s32.totalorder %s114, %s115
      %p124 = scmp.eq.s32.totalorder %s20, 0
      %p125 = por %p123, %p124
      %p126 = scmp.ne.s32.totalorder %s114, %s115
      %p127 = scmp.eq.s32.totalorder %s21, 1
      %p128 = por %p126, %p127
      %p130 = scmp.ne.s32.totalorder %s115, %s129
      %p131 = scmp.eq.s32.totalorder %s21, 0
      %p132 = por %p130, %p131
      %s133 = ssub.s32 %s15, %s22
      %p134 = scmp.eq.s32.totalorder %s133, 0
      %s136 = sadd.s32 %s135, 1
      %s137 = scalar_select %p134, %s135, %s136
      %p140 = pneg %p134
      %p141 = scmp.eq.s32.totalorder %s15, 1
      %p142 = por %p140, %p141
      %p143 = scmp.ne.s32.totalorder %s135, %s138
      %p144 = scmp.eq.s32.totalorder %s15, 0
      %p145 = por %p143, %p144
      %p146 = scmp.ne.s32.totalorder %s135, %s138
      %p147 = scmp.eq.s32.totalorder %s20, 1
      %p148 = por %p146, %p147
      %p149 = scmp.ne.s32.totalorder %s138, %s139
      %p150 = scmp.eq.s32.totalorder %s20, 0
      %p151 = por %p149, %p150
      %p152 = scmp.ne.s32.totalorder %s138, %s139
      %p153 = scmp.eq.s32.totalorder %s21, 1
      %p154 = por %p152, %p153
      %p156 = scmp.ne.s32.totalorder %s139, %s155
      %p157 = scmp.eq.s32.totalorder %s21, 0
      %p158 = por %p156, %p157
      %p159 = scmp.le.s32.totalorder 1, %s15
      %p160 = scmp.lt.s32.totalorder %s15, 3
      %p161 = pnand %p159, %p160
      %p162 = pneg %p161
      // Predicated region
      $region9: #{tpu_custom_call.1} parent=5 // pred_check
        _
      $region10: #{tpu_custom_call.1} parent=5 // pred_check_branch
        %164 = sbr.rel (%p161) target = $region12
      $region11: #{tpu_custom_call.1} parent=5 // pred_region
        %s165 = ssub.s32 %s15, 1
        // Predicated region
        $region13: #{tpu_custom_call.1} parent=11 // pred_check
          %p166 = pneg %p62
        $region14: #{tpu_custom_call.1} parent=11 // pred_check_branch
          %168 = sbr.rel (%p166) target = $region16
        $region15: #{tpu_custom_call.1} parent=11 // pred_region
          %s170 = ssub.s32 128, 128
          %171 = vsyncadd [#allocation5], %s170
          %s173 = sshll.u32 [#allocation4], 4
          %s174 = int_to_ptr.vmem [resolvable:$true] %s173
          %176 = dma.hbm_to_vmem [thread:$0]  %s1, 128, %s174, [#allocation5]
        $region16: #{tpu_custom_call.1} parent=11 // pred_fallthru
          _
        // Predicated region
        $region17: #{tpu_custom_call.1} parent=11 // pred_check
          %p177 = pneg %p83
        $region18: #{tpu_custom_call.1} parent=11 // pred_check_branch
          %179 = sbr.rel (%p177) target = $region20
        $region19: #{tpu_custom_call.1} parent=11 // pred_region
          _
        $region20: #{tpu_custom_call.1} parent=11 // pred_fallthru
          _
        // Predicated region
        $region21: #{tpu_custom_call.1} parent=11 // pred_check
          %p180 = pneg %p104
        $region22: #{tpu_custom_call.1} parent=11 // pred_check_branch
          %182 = sbr.rel (%p180) target = $region24
        $region23: #{tpu_custom_call.1} parent=11 // pred_region
          _
        $region24: #{tpu_custom_call.1} parent=11 // pred_fallthru
          _
        // Predicated region
        $region25: #{tpu_custom_call.1} parent=11 // pred_check
          %p183 = pneg %p125
        $region26: #{tpu_custom_call.1} parent=11 // pred_check_branch
          %185 = sbr.rel (%p183) target = $region28
        $region27: #{tpu_custom_call.1} parent=11 // pred_region
          _
        $region28: #{tpu_custom_call.1} parent=11 // pred_fallthru
          _
      $region12: #{tpu_custom_call.1} parent=5 // pred_fallthru
        _
      %p186 = scmp.lt.s32.totalorder %s15, 2
      // Predicated region
      $region29: #{tpu_custom_call.1} parent=5 // pred_check
        %p187 = pneg %p186
      $region30: #{tpu_custom_call.1} parent=5 // pred_check_branch
        %189 = sbr.rel (%p187) target = $region32
      $region31: #{tpu_custom_call.1} parent=5 // pred_region
        // Predicated region
        $region33: #{tpu_custom_call.1} parent=31 // pred_check
          %p190 = pneg %p35
        $region34: #{tpu_custom_call.1} parent=31 // pred_check_branch
          %192 = sbr.rel (%p190) target = $region36
        $region35: #{tpu_custom_call.1} parent=31 // pred_region
          %p193 = scmp.lt.s32.totalorder %s15, 1
          %s194 = scalar_select %p193, %s15, 1
          %s195 = smul.addr %s194, 2
          %s196 = smul.addr %s195, 4
          %s197 = scalar_lea.vmem %s0, %s196
        $region36: #{tpu_custom_call.1} parent=31 // pred_fallthru
          _
      $region32: #{tpu_custom_call.1} parent=5 // pred_fallthru
        _
      %p198 = scmp.le.s32.totalorder 1, %s15
      %p199 = scmp.lt.s32.totalorder %s15, 3
      %p200 = pnand %p198, %p199
      %p201 = pneg %p200
      // Predicated region
      $region37: #{tpu_custom_call.1} parent=5 // pred_check
        _
      $region38: #{tpu_custom_call.1} parent=5 // pred_check_branch
        %203 = sbr.rel (%p200) target = $region40
      $region39: #{tpu_custom_call.1} parent=5 // pred_region
        %s204 = ssub.s32 %s15, 1
        // Predicated region
        $region41: #{tpu_custom_call.1} parent=39 // pred_check
          %p205 = pneg %p62
        $region42: #{tpu_custom_call.1} parent=39 // pred_check_branch
          %207 = sbr.rel (%p205) target = $region44
        $region43: #{tpu_custom_call.1} parent=39 // pred_region
          %208 = dma.done [#allocation5], 128
        $region44: #{tpu_custom_call.1} parent=39 // pred_fallthru
          _
        %p209 = scmp.lt.s32.totalorder %s20, 1
        %s210 = scalar_select %p209, %s20, 1
        %s211 = smul.addr %s210, 2
        %s212 = smul.addr %s211, 4
        %s213 = scalar_lea.vmem %s0, %s212
        %p214 = pneg %p41
        %p215 = pneg %p38
        %p216 = pneg %p62
        %p217 = pneg %p59
        %p218 = pneg %p83
        %p219 = pneg %p80
        %p220 = pneg %p104
        %p221 = pneg %p101
        %p222 = pneg %p125
        %p223 = pneg %p122
        %p224 = pneg %p151
        %p225 = pneg %p148
        %s226 = sand.u32 %s138, 1
        %s227 = scalar_lea.sflag [#allocation6], %s226
        %s228 = sand.u32 %s138, 1
        %s229 = smul.addr %s228, 16
        %s230 = scalar_lea.vmem [#allocation7], %s229
        %p231 = scmp.lt.s32.totalorder %s20, 1
        %s232 = scalar_select %p231, %s20, 1
        %s233 = smul.addr %s232, 2
        %s234 = smul.addr %s233, 4
        %s235 = scalar_lea.vmem %s0, %s234
        %v236 = vlaneseq
        %v237 = vand.u32 %v236, 127
        %v238 = vadd.s32 %v237, 128
        %v239 = vand.u32 %v237, 15
        %v240 = vand.u32 %v238, 15
        %vm241 = vcmp.ge.s32.totalorder %v237, 16
        %vm242 = vcmp.ge.s32.totalorder %v238, 16
        %vm243 = vcmp.lt.s32.totalorder %v237, 240
        %vm244 = vcmp.lt.s32.totalorder %v238, 240
        %vm245 = vcmp.ge.s32.totalorder %v239, 1
        %vm246 = vcmp.ge.s32.totalorder %v240, 1
        %vm247 = vcmp.le.s32.totalorder %v239, 14
        %vm248 = vcmp.le.s32.totalorder %v240, 14
        %v249 = vld [vmem:[%s235] sm:$0xff]
        %v251 = vcombine.high %v249, %v249
        %253 = vrot.lane.b32.xlu0 %v249, 17
        %v254 = vpop.permute.xlu0 %253
        %255 = vrot.lane.b32.xlu0 %v251, 17
        %v256 = vpop.permute.xlu0 %255
        %vm257 = vcmp.lt.s32.totalorder %v237, 17
        %v258 = vsel %vm257, %v254, %v256
        %v259 = vsel %vm257, %v256, %v254
        %vm260 = vmand %vm241, %vm245
        %vm261 = vmand %vm242, %vm246
        %v262 = vsel %vm260, 1, 0
        %v263 = vsel %vm261, 1, 0
        %vm264 = vcmp.eq.s32.totalorder %v262, 1
        %vm265 = vcmp.eq.s32.totalorder %v263, 1
        %v266 = vsel %vm264, %v259, 0.0
        %v267 = vsel %vm265, %v258, 0.0
        %268 = vst [vmem:[#allocation2] sm:$0xf] %v266
        %269 = vst [vmem:[#allocation2 + $0x8] sm:$0xf] %v267
        %270 = vrot.lane.b32.xlu0 %v249, 16
        %v271 = vpop.permute.xlu0 %270
        %272 = vrot.lane.b32.xlu0 %v251, 16
        %v273 = vpop.permute.xlu0 %272
        %vm274 = vcmp.lt.s32.totalorder %v237, 16
        %v275 = vsel %vm274, %v271, %v273
        %v276 = vsel %vm274, %v273, %v271
        %v277 = vsel %vm241, 1, 0
        %v278 = vsel %vm242, 1, 0
        %vm279 = vcmp.eq.s32.totalorder %v277, 1
        %vm280 = vcmp.eq.s32.totalorder %v278, 1
        %v281 = vsel %vm279, %v276, 0.0
        %v282 = vsel %vm280, %v275, 0.0
        %v285 = vrot.slane %v281, 4
        %v286 = vrot.slane %v282, 4
        %289 = vst [vmem:[#allocation2] sm:$0xf0] %v285
        %290 = vst [vmem:[#allocation2 + $0x8] sm:$0xf0] %v286
        %291 = vrot.lane.b32.xlu0 %v249, 15
        %v292 = vpop.permute.xlu0 %291
        %293 = vrot.lane.b32.xlu0 %v251, 15
        %v294 = vpop.permute.xlu0 %293
        %vm295 = vcmp.lt.s32.totalorder %v237, 15
        %v296 = vsel %vm295, %v292, %v294
        %v297 = vsel %vm295, %v294, %v292
        %vm298 = vmand %vm241, %vm247
        %vm299 = vmand %vm242, %vm248
        %v300 = vsel %vm298, 1, 0
        %v301 = vsel %vm299, 1, 0
        %vm302 = vcmp.eq.s32.totalorder %v300, 1
        %vm303 = vcmp.eq.s32.totalorder %v301, 1
        %v304 = vsel %vm302, %v297, 0.0
        %v305 = vsel %vm303, %v296, 0.0
        %306 = vst [vmem:[#allocation2 + $0x10] sm:$0xf] %v304
        %307 = vst [vmem:[#allocation2 + $0x18] sm:$0xf] %v305
        %308 = vrot.lane.b32.xlu0 %v249, 1
        %v309 = vpop.permute.xlu0 %308
        %310 = vrot.lane.b32.xlu0 %v251, 1
        %v311 = vpop.permute.xlu0 %310
        %vm312 = vcmp.lt.s32.totalorder %v237, 1
        %v313 = vsel %vm312, %v309, %v311
        %v314 = vsel %vm312, %v311, %v309
        %v315 = vsel %vm245, 1, 0
        %v316 = vsel %vm246, 1, 0
        %vm317 = vcmp.eq.s32.totalorder %v315, 1
        %vm318 = vcmp.eq.s32.totalorder %v316, 1
        %v319 = vsel %vm317, %v314, 0.0
        %v320 = vsel %vm318, %v313, 0.0
        %v323 = vrot.slane %v319, 4
        %v324 = vrot.slane %v320, 4
        %327 = vst [vmem:[#allocation2 + $0x10] sm:$0xf0] %v323
        %328 = vst [vmem:[#allocation2 + $0x18] sm:$0xf0] %v324
        %329 = vst [vmem:[#allocation2 + $0x20] sm:$0xf] %v249
        %330 = vst [vmem:[#allocation2 + $0x28] sm:$0xf] %v251
        %331 = vrot.lane.b32.xlu0 %v249, 127
        %v332 = vpop.permute.xlu0 %331
        %333 = vrot.lane.b32.xlu0 %v251, 127
        %v334 = vpop.permute.xlu0 %333
        %vm335 = vcmp.lt.s32.totalorder %v237, 127
        %v336 = vsel %vm335, %v332, %v334
        %v337 = vsel %vm335, %v334, %v332
        %v338 = vsel %vm247, 1, 0
        %v339 = vsel %vm248, 1, 0
        %vm340 = vcmp.eq.s32.totalorder %v338, 1
        %vm341 = vcmp.eq.s32.totalorder %v339, 1
        %v342 = vsel %vm340, %v336, 0.0
        %v343 = vsel %vm341, %v337, 0.0
        %v346 = vrot.slane %v342, 4
        %v347 = vrot.slane %v343, 4
        %350 = vst [vmem:[#allocation2 + $0x20] sm:$0xf0] %v346
        %351 = vst [vmem:[#allocation2 + $0x28] sm:$0xf0] %v347
        %352 = vrot.lane.b32.xlu0 %v249, 113
        %v353 = vpop.permute.xlu0 %352
        %354 = vrot.lane.b32.xlu0 %v251, 113
        %v355 = vpop.permute.xlu0 %354
        %vm356 = vcmp.lt.s32.totalorder %v237, 113
        %v357 = vsel %vm356, %v353, %v355
        %v358 = vsel %vm356, %v355, %v353
        %vm359 = vmand %vm243, %vm245
        %vm360 = vmand %vm244, %vm246
        %v361 = vsel %vm359, 1, 0
        %v362 = vsel %vm360, 1, 0
        %vm363 = vcmp.eq.s32.totalorder %v361, 1
        %vm364 = vcmp.eq.s32.totalorder %v362, 1
        %v365 = vsel %vm363, %v357, 0.0
        %v366 = vsel %vm364, %v358, 0.0
        %367 = vst [vmem:[#allocation2 + $0x30] sm:$0xf] %v365
        %368 = vst [vmem:[#allocation2 + $0x38] sm:$0xf] %v366
        %369 = vrot.lane.b32.xlu0 %v249, 112
        %v370 = vpop.permute.xlu0 %369
        %371 = vrot.lane.b32.xlu0 %v251, 112
        %v372 = vpop.permute.xlu0 %371
        %vm373 = vcmp.lt.s32.totalorder %v237, 112
        %v374 = vsel %vm373, %v370, %v372
        %v375 = vsel %vm373, %v372, %v370
        %v376 = vsel %vm243, 1, 0
        %v377 = vsel %vm244, 1, 0
        %vm378 = vcmp.eq.s32.totalorder %v376, 1
        %vm379 = vcmp.eq.s32.totalorder %v377, 1
        %v380 = vsel %vm378, %v374, 0.0
        %v381 = vsel %vm379, %v375, 0.0
        %v384 = vrot.slane %v380, 4
        %v385 = vrot.slane %v381, 4
        %388 = vst [vmem:[#allocation2 + $0x30] sm:$0xf0] %v384
        %389 = vst [vmem:[#allocation2 + $0x38] sm:$0xf0] %v385
        %390 = vrot.lane.b32.xlu0 %v249, 111
        %v391 = vpop.permute.xlu0 %390
        %392 = vrot.lane.b32.xlu0 %v251, 111
        %v393 = vpop.permute.xlu0 %392
        %vm394 = vcmp.lt.s32.totalorder %v237, 111
        %v395 = vsel %vm394, %v391, %v393
        %v396 = vsel %vm394, %v393, %v391
        %vm397 = vmand %vm243, %vm247
        %vm398 = vmand %vm244, %vm248
        %v399 = vsel %vm397, 1, 0
        %v400 = vsel %vm398, 1, 0
        %vm401 = vcmp.eq.s32.totalorder %v399, 1
        %vm402 = vcmp.eq.s32.totalorder %v400, 1
        %v403 = vsel %vm401, %v395, 0.0
        %v404 = vsel %vm402, %v396, 0.0
        %405 = vst [vmem:[#allocation2 + $0x40] sm:$0xf] %v403
        %406 = vst [vmem:[#allocation2 + $0x48] sm:$0xf] %v404
        %v407 = vld [vmem:[#allocation4] sm:$0xff]
        %v408 = vld [vmem:[#allocation2] sm:$0xff]
        %v409 = vld [vmem:[#allocation2 + $0x8] sm:$0xff]
        %v410 = vld [vmem:[#allocation2 + $0x10] sm:$0xff]
        %v411 = vld [vmem:[#allocation2 + $0x18] sm:$0xff]
        %v412 = vld [vmem:[#allocation2 + $0x20] sm:$0xff]
        %v413 = vld [vmem:[#allocation2 + $0x28] sm:$0xff]
        %v414 = vld [vmem:[#allocation2 + $0x30] sm:$0xff]
        %v415 = vld [vmem:[#allocation2 + $0x38] sm:$0xff]
        %v416 = vld [vmem:[#allocation2 + $0x40] sm:$0xf]
        %v417 = vld [vmem:[#allocation2 + $0x48] sm:$0xf]
        %v418 = vld [vmem:[%s2] sm:$0xff]
        %420 = vset.pattern.permute.xlu0 0
        %421 = vperm.xlu0 %420, %v418
        %v422 = vpop.permute.xlu0 %421
        %vm424 = vcmask 293888
        %v426 = vsel %vm424, %v407, 0
        %vm428 = vcmask 1043456
        %v430 = vsel %vm428, %v416, 0
        %v433 = vsel %vm428, %v417, 0
        %435 = vmatprep.subr.mxu0 %v409
        %436 = vmatpush1.msra.mxu0 %v408
        %437 = vmatprep.subr.mxu0 %v411
        %438 = vmatpush1.msra.mxu0 %v410
        %439 = vmatprep.subr.mxu0 %v413
        %440 = vmatpush1.msra.mxu0 %v412
        %441 = vmatprep.subr.mxu0 %v415
        %442 = vmatpush1.msra.mxu0 %v414
        %443 = vmatprep.subr.mxu0 %v433
        %444 = vmatpush1.msra.mxu0 %v430
        %445 = vmatprep.subr.mxu0 0.0
        %446 = vmatpush1.msra.mxu0 0.0
        %447 = vmatprep.subr.mxu0 0.0
        %448 = vmatpush1.msra.mxu0 0.0
        %449 = vmatprep.subr.mxu0 0.0
        %450 = vmatpush1.msra.mxu0 0.0
        %451 = vmatprep.subr.mxu0 0.0
        %452 = vmatpush1.msra.mxu0 0.0
        %453 = vmatprep.subr.mxu0 0.0
        %454 = vmatpush1.msra.mxu0 0.0
        %455 = vmatprep.subr.mxu0 0.0
        %456 = vmatpush1.msra.mxu0 0.0
        %457 = vmatprep.subr.mxu0 0.0
        %458 = vmatpush1.msra.mxu0 0.0
        %459 = vmatprep.subr.mxu0 0.0
        %460 = vmatpush1.msra.mxu0 0.0
        %461 = vmatprep.subr.mxu0 0.0
        %462 = vmatpush1.msra.mxu0 0.0
        %463 = vmatprep.subr.mxu0 0.0
        %464 = vmatpush1.msra.mxu0 0.0
        %465 = vmatprep.subr.mxu0 0.0
        %466 = vmatpush1.msra.mxu0 0.0
        %467 = vmatprep.subr.mxu0 0.0
        %468 = vmatpush1.msra.mxu0 0.0
        %469 = vmatprep.subr.mxu0 0.0
        %470 = vmatpush1.msra.mxu0 0.0
        %471 = vmatprep.subr.mxu0 0.0
        %472 = vmatpush1.msra.mxu0 0.0
        %473 = vmatprep.subr.mxu0 0.0
        %474 = vmatpush1.msra.mxu0 0.0
        %475 = vmatprep.subr.mxu0 0.0
        %476 = vmatpush1.msra.mxu0 0.0
        %477 = vmatprep.subr.mxu0 0.0
        %478 = vmatpush1.msra.mxu0 0.0
        %479 = vmatprep.subr.mxu0 0.0
        %480 = vmatpush1.msra.mxu0 0.0
        %481 = vmatprep.subr.mxu0 0.0
        %482 = vmatpush1.msra.mxu0 0.0
        %483 = vmatprep.subr.mxu0 0.0
        %484 = vmatpush1.msra.mxu0 0.0
        %485 = vmatprep.subr.mxu0 0.0
        %486 = vmatpush1.msra.mxu0 0.0
        %487 = vmatprep.subr.mxu0 0.0
        %488 = vmatpush1.msra.mxu0 0.0
        %489 = vmatprep.subr.mxu0 0.0
        %490 = vmatpush1.msra.mxu0 0.0
        %491 = vmatprep.subr.mxu0 0.0
        %492 = vmatpush1.msra.mxu0 0.0
        %493 = vmatprep.subr.mxu0 0.0
        %494 = vmatpush1.msra.mxu0 0.0
        %495 = vmatprep.subr.mxu0 0.0
        %496 = vmatpush1.msra.mxu0 0.0
        %497 = vmatprep.subr.mxu0 0.0
        %498 = vmatpush1.msra.mxu0 0.0
        %499 = vmatprep.mubr.f32.mxu0 0.0
        %500 = vmatmul.mubr.f32.gmra.mrb[0].mxu0 %v426
        %v501 = vpop.f32.mrb[0].mxu0
        %v502 = vadd.f32 %v422, %v501
        %v503 = vpop.f32.mrb[0].mxu0
        %v504 = vadd.f32 %v422, %v503
        %505 = vdwg.mxu0
        %v506 = vmax.f32 %v502, 0.0
        %v507 = vmax.f32 %v504, 0.0
        %508 = vrot.lane.b32.xlu0 %v506, 17
        %v509 = vpop.permute.xlu0 %508
        %510 = vrot.lane.b32.xlu0 %v507, 17
        %v511 = vpop.permute.xlu0 %510
        %v512 = vsel %vm257, %v509, %v511
        %v513 = vsel %vm257, %v511, %v509
        %v514 = vsel %vm264, %v513, 0.0
        %v515 = vsel %vm265, %v512, 0.0
        %516 = vst [vmem:[#allocation3] sm:$0xff] %v514
        %517 = vst [vmem:[#allocation3 + $0x8] sm:$0xff] %v515
        %518 = vrot.lane.b32.xlu0 %v506, 16
        %v519 = vpop.permute.xlu0 %518
        %520 = vrot.lane.b32.xlu0 %v507, 16
        %v521 = vpop.permute.xlu0 %520
        %v522 = vsel %vm274, %v519, %v521
        %v523 = vsel %vm274, %v521, %v519
        %v524 = vsel %vm279, %v523, 0.0
        %v525 = vsel %vm280, %v522, 0.0
        %526 = vst [vmem:[#allocation3 + $0x10] sm:$0xff] %v524
        %527 = vst [vmem:[#allocation3 + $0x18] sm:$0xff] %v525
        %528 = vrot.lane.b32.xlu0 %v506, 15
        %v529 = vpop.permute.xlu0 %528
        %530 = vrot.lane.b32.xlu0 %v507, 15
        %v531 = vpop.permute.xlu0 %530
        %v532 = vsel %vm295, %v529, %v531
        %v533 = vsel %vm295, %v531, %v529
        %v534 = vsel %vm302, %v533, 0.0
        %v535 = vsel %vm303, %v532, 0.0
        %536 = vst [vmem:[#allocation3 + $0x20] sm:$0xff] %v534
        %537 = vst [vmem:[#allocation3 + $0x28] sm:$0xff] %v535
        %538 = vrot.lane.b32.xlu0 %v506, 1
        %v539 = vpop.permute.xlu0 %538
        %540 = vrot.lane.b32.xlu0 %v507, 1
        %v541 = vpop.permute.xlu0 %540
        %v542 = vsel %vm312, %v539, %v541
        %v543 = vsel %vm312, %v541, %v539
        %v544 = vsel %vm317, %v543, 0.0
        %v545 = vsel %vm318, %v542, 0.0
        %546 = vst [vmem:[#allocation3 + $0x30] sm:$0xff] %v544
        %547 = vst [vmem:[#allocation3 + $0x38] sm:$0xff] %v545
        %548 = vst [vmem:[#allocation3 + $0x40] sm:$0xff] %v506
        %549 = vst [vmem:[#allocation3 + $0x48] sm:$0xff] %v507
        %550 = vrot.lane.b32.xlu0 %v506, 127
        %v551 = vpop.permute.xlu0 %550
        %552 = vrot.lane.b32.xlu0 %v507, 127
        %v553 = vpop.permute.xlu0 %552
        %v554 = vsel %vm335, %v551, %v553
        %v555 = vsel %vm335, %v553, %v551
        %v556 = vsel %vm340, %v554, 0.0
        %v557 = vsel %vm341, %v555, 0.0
        %558 = vst [vmem:[#allocation3 + $0x50] sm:$0xff] %v556
        %559 = vst [vmem:[#allocation3 + $0x58] sm:$0xff] %v557
        %560 = vrot.lane.b32.xlu0 %v506, 113
        %v561 = vpop.permute.xlu0 %560
        %562 = vrot.lane.b32.xlu0 %v507, 113
        %v563 = vpop.permute.xlu0 %562
        %v564 = vsel %vm356, %v561, %v563
        %v565 = vsel %vm356, %v563, %v561
        %v566 = vsel %vm363, %v564, 0.0
        %v567 = vsel %vm364, %v565, 0.0
        %568 = vst [vmem:[#allocation3 + $0x60] sm:$0xff] %v566
        %569 = vst [vmem:[#allocation3 + $0x68] sm:$0xff] %v567
        %570 = vrot.lane.b32.xlu0 %v506, 112
        %v571 = vpop.permute.xlu0 %570
        %572 = vrot.lane.b32.xlu0 %v507, 112
        %v573 = vpop.permute.xlu0 %572
        %v574 = vsel %vm373, %v571, %v573
        %v575 = vsel %vm373, %v573, %v571
        %v576 = vsel %vm378, %v574, 0.0
        %v577 = vsel %vm379, %v575, 0.0
        %578 = vst [vmem:[#allocation3 + $0x70] sm:$0xff] %v576
        %579 = vst [vmem:[#allocation3 + $0x78] sm:$0xff] %v577
        %580 = vrot.lane.b32.xlu0 %v506, 111
        %v581 = vpop.permute.xlu0 %580
        %582 = vrot.lane.b32.xlu0 %v507, 111
        %v583 = vpop.permute.xlu0 %582
        %v584 = vsel %vm394, %v581, %v583
        %v585 = vsel %vm394, %v583, %v581
        %v586 = vsel %vm401, %v584, 0.0
        %v587 = vsel %vm402, %v585, 0.0
        %588 = vst [vmem:[#allocation3 + $0x80] sm:$0xff] %v586
        %589 = vst [vmem:[#allocation3 + $0x88] sm:$0xff] %v587
        %v590 = vld [vmem:[%s3] sm:$0xff]
        %v591 = vld [vmem:[#allocation3] sm:$0xff]
        %v592 = vld [vmem:[#allocation3 + $0x8] sm:$0xff]
        %v593 = vld [vmem:[#allocation3 + $0x10] sm:$0xff]
        %v594 = vld [vmem:[#allocation3 + $0x18] sm:$0xff]
        %v595 = vld [vmem:[#allocation3 + $0x20] sm:$0xff]
        %v596 = vld [vmem:[#allocation3 + $0x28] sm:$0xff]
        %v597 = vld [vmem:[#allocation3 + $0x30] sm:$0xff]
        %v598 = vld [vmem:[#allocation3 + $0x38] sm:$0xff]
        %v599 = vld [vmem:[#allocation3 + $0x40] sm:$0xff]
        %v600 = vld [vmem:[#allocation3 + $0x48] sm:$0xff]
        %v601 = vld [vmem:[#allocation3 + $0x50] sm:$0xff]
        %v602 = vld [vmem:[#allocation3 + $0x58] sm:$0xff]
        %v603 = vld [vmem:[#allocation3 + $0x60] sm:$0xff]
        %v604 = vld [vmem:[#allocation3 + $0x68] sm:$0xff]
        %v605 = vld [vmem:[#allocation3 + $0x70] sm:$0xff]
        %v606 = vld [vmem:[#allocation3 + $0x78] sm:$0xff]
        %v607 = vld [vmem:[#allocation3 + $0x80] sm:$0xff]
        %v608 = vld [vmem:[#allocation3 + $0x88] sm:$0xff]
        %v609 = vld [vmem:[%s4] sm:$0xff]
        %611 = vset.pattern.permute.xlu0 0
        %612 = vperm.xlu0 %611, %v609
        %v613 = vpop.permute.xlu0 %612
        %vm615 = vcmask 588800
        %v617 = vsel %vm615, %v590, 0
        %619 = vmatprep.subr.mxu0 %v592
        %620 = vmatpush1.msra.mxu0 %v591
        %621 = vmatprep.subr.mxu0 %v594
        %622 = vmatpush1.msra.mxu0 %v593
        %623 = vmatprep.subr.mxu0 %v596
        %624 = vmatpush1.msra.mxu0 %v595
        %625 = vmatprep.subr.mxu0 %v598
        %626 = vmatpush1.msra.mxu0 %v597
        %627 = vmatprep.subr.mxu0 %v600
        %628 = vmatpush1.msra.mxu0 %v599
        %629 = vmatprep.subr.mxu0 %v602
        %630 = vmatpush1.msra.mxu0 %v601
        %631 = vmatprep.subr.mxu0 %v604
        %632 = vmatpush1.msra.mxu0 %v603
        %633 = vmatprep.subr.mxu0 %v606
        %634 = vmatpush1.msra.mxu0 %v605
        %635 = vmatprep.subr.mxu0 %v608
        %636 = vmatpush1.msra.mxu0 %v607
        %637 = vmatprep.subr.mxu0 0.0
        %638 = vmatpush1.msra.mxu0 0.0
        %639 = vmatprep.subr.mxu0 0.0
        %640 = vmatpush1.msra.mxu0 0.0
        %641 = vmatprep.subr.mxu0 0.0
        %642 = vmatpush1.msra.mxu0 0.0
        %643 = vmatprep.subr.mxu0 0.0
        %644 = vmatpush1.msra.mxu0 0.0
        %645 = vmatprep.subr.mxu0 0.0
        %646 = vmatpush1.msra.mxu0 0.0
        %647 = vmatprep.subr.mxu0 0.0
        %648 = vmatpush1.msra.mxu0 0.0
        %649 = vmatprep.subr.mxu0 0.0
        %650 = vmatpush1.msra.mxu0 0.0
        %651 = vmatprep.subr.mxu0 0.0
        %652 = vmatpush1.msra.mxu0 0.0
        %653 = vmatprep.subr.mxu0 0.0
        %654 = vmatpush1.msra.mxu0 0.0
        %655 = vmatprep.subr.mxu0 0.0
        %656 = vmatpush1.msra.mxu0 0.0
        %657 = vmatprep.subr.mxu0 0.0
        %658 = vmatpush1.msra.mxu0 0.0
        %659 = vmatprep.subr.mxu0 0.0
        %660 = vmatpush1.msra.mxu0 0.0
        %661 = vmatprep.subr.mxu0 0.0
        %662 = vmatpush1.msra.mxu0 0.0
        %663 = vmatprep.subr.mxu0 0.0
        %664 = vmatpush1.msra.mxu0 0.0
        %665 = vmatprep.subr.mxu0 0.0
        %666 = vmatpush1.msra.mxu0 0.0
        %667 = vmatprep.subr.mxu0 0.0
        %668 = vmatpush1.msra.mxu0 0.0
        %669 = vmatprep.subr.mxu0 0.0
        %670 = vmatpush1.msra.mxu0 0.0
        %671 = vmatprep.subr.mxu0 0.0
        %672 = vmatpush1.msra.mxu0 0.0
        %673 = vmatprep.subr.mxu0 0.0
        %674 = vmatpush1.msra.mxu0 0.0
        %675 = vmatprep.subr.mxu0 0.0
        %676 = vmatpush1.msra.mxu0 0.0
        %677 = vmatprep.subr.mxu0 0.0
        %678 = vmatpush1.msra.mxu0 0.0
        %679 = vmatprep.subr.mxu0 0.0
        %680 = vmatpush1.msra.mxu0 0.0
        %681 = vmatprep.subr.mxu0 0.0
        %682 = vmatpush1.msra.mxu0 0.0
        %683 = vmatprep.mubr.f32.mxu0 0.0
        %684 = vmatmul.mubr.f32.gmra.mrb[0].mxu0 %v617
        %v685 = vpop.f32.mrb[0].mxu0
        %v686 = vadd.f32 %v613, %v685
        %v687 = vpop.f32.mrb[0].mxu0
        %v688 = vadd.f32 %v613, %v687
        %689 = vdwg.mxu0
        %v690 = vmax.f32 %v686, 0.0
        %v691 = vmax.f32 %v688, 0.0
        %692 = vst [vmem:[%s230] sm:$0xff] %v690
        %693 = vst [vmem:[%s230 + $0x8] sm:$0xff] %v691
        %s694 = sand.u32 %s138, 1
        %s695 = scalar_lea.sflag [#allocation6], %s694
        %s696 = sand.u32 %s138, 1
        %s697 = smul.addr %s696, 16
        %s698 = scalar_lea.vmem [#allocation7], %s697
        // Predicated region
        $region45: #{tpu_custom_call.1} parent=39 // pred_check
          %p699 = pneg %p148
        $region46: #{tpu_custom_call.1} parent=39 // pred_check_branch
          %701 = sbr.rel (%p699) target = $region48
        $region47: #{tpu_custom_call.1} parent=39 // pred_region
          %s703 = ssub.s32 256, 256
          %704 = vsyncadd %s695, %s703
          %s705 = smul.addr %s20, 2
          %s706 = smul.addr %s705, 128
          %s707 = scalar_lea.hbm %s5, %s706
          %s709 = sshll.u32 %s698, 4
          %s710 = int_to_ptr.vmem [resolvable:$true] %s709
          %712 = dma.vmem_to_hbm [thread:$0]  %s710, 256, %s707, %s695
        $region48: #{tpu_custom_call.1} parent=39 // pred_fallthru
          _
      $region40: #{tpu_custom_call.1} parent=5 // pred_fallthru
        _
      %p713 = scmp.le.s32.totalorder 2, %s15
      // Predicated region
      $region49: #{tpu_custom_call.1} parent=5 // pred_check
        %p714 = pneg %p713
      $region50: #{tpu_custom_call.1} parent=5 // pred_check_branch
        %716 = sbr.rel (%p714) target = $region52
      $region51: #{tpu_custom_call.1} parent=5 // pred_region
        %s717 = ssub.s32 %s15, 2
        // Predicated region
        $region53: #{tpu_custom_call.1} parent=51 // pred_check
          %p718 = pneg %p154
        $region54: #{tpu_custom_call.1} parent=51 // pred_check_branch
          %720 = sbr.rel (%p718) target = $region56
        $region55: #{tpu_custom_call.1} parent=51 // pred_region
          %s721 = sand.u32 %s139, 1
          %s722 = scalar_lea.sflag [#allocation6], %s721
          %s723 = sand.u32 %s139, 1
          %s724 = smul.addr %s723, 16
          %s725 = scalar_lea.vmem [#allocation7], %s724
          %726 = dma.done %s722, 256
        $region56: #{tpu_custom_call.1} parent=51 // pred_fallthru
          _
      $region52: #{tpu_custom_call.1} parent=5 // pred_fallthru
        _
    $region6: #{tpu_custom_call.1} parent=1 // loop_footer
      %s19 = sadd.s32 1, %s15
    $region7: #{tpu_custom_call.1} parent=1 // loop_footer_branch
      %14 = sbr.rel target = $region3
    $region8: #{tpu_custom_call.1} parent=1 // loop_exit
      _
    %727 = vsyncpa [#allocation5], 1
    %s728 = scalar_lea.sflag [#allocation5], 1
    %729 = vsyncpa %s728, 1
    %730 = vsyncpa [#allocation6], 1
    %s731 = scalar_lea.sflag [#allocation6], 1
    %732 = vsyncpa %s731, 1

</llo_original>
